<compile_context>
chip_gen: v5e
topology: v5e:2x2
jax: 0.10.0
libtpu: 0.0.40
codegen_flags: <defaults>
</compile_context>

<pallas_src>
import jax
import jax.numpy as jnp
from jax.experimental import pallas as pl
from jax.experimental.pallas import tpu as pltpu

EPS = 1e-5  # PyTorch BatchNorm1d default eps
LANE = 128


def _round_up(n, m):
    return ((n + m - 1) // m) * m


# ------------------------------ kernel ------------------------------

def varmax_kernel(x_ref,
                  w1_ref, b1_ref,
                  w2_ref, b2_ref,
                  w3_ref, b3_ref,
                  w4_ref, b4_ref,
                  o_ref):
    # Weights are bf16; activations are cast to bf16 right before each MXU push,
    # accumulation / bias-add / ReLU stay in f32.
    h = x_ref[...].astype(jnp.bfloat16)
    h = jnp.maximum(
        jnp.dot(h, w1_ref[...], preferred_element_type=jnp.float32) + b1_ref[...], 0.0)
    h = jnp.maximum(
        jnp.dot(h.astype(jnp.bfloat16), w2_ref[...],
                preferred_element_type=jnp.float32) + b2_ref[...], 0.0)
    h = jnp.maximum(
        jnp.dot(h.astype(jnp.bfloat16), w3_ref[...],
                preferred_element_type=jnp.float32) + b3_ref[...], 0.0)
    o_ref[...] = (
        jnp.dot(h.astype(jnp.bfloat16), w4_ref[...],
                preferred_element_type=jnp.float32) + b4_ref[...])


# -------------------------- host-side fusion (one-time) --------------------------

def _fold_bn_into_linear(bn, w, b):
    """BN(x) @ W + b  ==  x @ W' + b'   (eval-mode BN with running stats).

    bn: (4, F) rows [gamma, beta, running_mean, running_var]; w: (F, N); b: (1, N).
    """
    gamma, beta, mean, var = bn[0], bn[1], bn[2], bn[3]
    scale = gamma * jax.lax.rsqrt(var + EPS)          # (F,)
    shift = beta - mean * scale                        # (F,)
    w_f = scale[:, None] * w                           # (F, N)
    b_f = b + shift[None, :] @ w                       # (1, N)
    return w_f, b_f


def prepare_params(params):
    """Fold the 4 BatchNorms into their following Linears, zero-pad every N dim to
    128 lanes (K of layer i+1 matches padded N of layer i; K of layer 1 stays D_in),
    and cast weights to bf16.  Call ONCE; result is reused across forward calls."""
    (bn1, w1, b1, bn2, w2, b2, bn3, w3, b3, bn4, w4, b4) = params
    fused = [
        _fold_bn_into_linear(bn1, w1, b1),
        _fold_bn_into_linear(bn2, w2, b2),
        _fold_bn_into_linear(bn3, w3, b3),
        _fold_bn_into_linear(bn4, w4, b4),
    ]
    num_classes = int(w4.shape[1])

    padded = []
    k_pad = int(fused[0][0].shape[0])                  # first K unpadded (= D_in)
    for w, b in fused:
        K, N = w.shape
        Np = _round_up(int(N), LANE)
        w_p = (jnp.zeros((k_pad, Np), jnp.float32)
               .at[:K, :N].set(w)
               .astype(jnp.bfloat16))
        b_p = jnp.zeros((1, Np), jnp.float32).at[:, :N].set(b[0])
        padded.extend([w_p, b_p])
        k_pad = Np                                      # next layer's K
    return tuple(padded), num_classes


# ------------------------------ wrapper ------------------------------

def _choose_batch_tile(B):
    """Few large steps; even step count so v7x's 2 TensorCores both get work."""
    B8 = _round_up(B, 8)
    if B8 <= 128:
        return B8                                       # single step
    half = _round_up((B8 + 1) // 2, 8)
    return min(half, 1024)                              # 2 steps small/medium B, capped


def unified_varmax_forward(x, fused_params, num_classes, *, batch_tile=None):
    """Full fused MLP chain in one Pallas kernel, batch-tiled, lane-dense output."""
    w1, b1, w2, b2, w3, b3, w4, b4 = fused_params
    B, D_in = x.shape
    assert D_in == w1.shape[0], "input feature size mismatch with fused params"
    C_pad = w4.shape[1]

    if batch_tile is None:
        batch_tile = _choose_batch_tile(B)
    B_pad = _round_up(B, batch_tile)

    x_p = x.astype(jnp.float32)
    if B_pad != B:
        # Padded batch rows only produce output rows that are sliced off below.
        x_p = jnp.zeros((B_pad, D_in), jnp.float32).at[:B].set(x_p)

    def resident(a):
        # Tiny fused params (<=64 KiB each in bf16): whole tensor resident every step.
        return pl.BlockSpec(a.shape, lambda i: (0, 0))

    in_specs = [
        # x streams per batch tile; last dim == full array dim (no feature padding).
        pl.BlockSpec((batch_tile, D_in), lambda i: (i, 0)),
        resident(w1), resident(b1),
        resident(w2), resident(b2),
        resident(w3), resident(b3),
        resident(w4), resident(b4),
    ]
    out_spec = pl.BlockSpec((batch_tile, C_pad), lambda i: (i, 0))

    out_p = pl.pallas_call(
        varmax_kernel,
        out_shape=jax.ShapeDtypeStruct((B_pad, C_pad), jnp.float32),
        grid_spec=pltpu.PrefetchScalarGridSpec(
            num_scalar_prefetch=0,
            grid=(B_pad // batch_tile,),
            in_specs=in_specs,
            out_specs=out_spec,
        ),
        compiler_params=pltpu.CompilerParams(
            dimension_semantics=("parallel",),
        ),
    )(x_p, w1, b1, w2, b2, w3, b3, w4, b4)

    return out_p[:B, :num_classes]


# ------------------------- parameter construction -------------------------

def _kaiming_normal_fan_out(key, out_features, in_features):
    """PyTorch kaiming_normal_(mode='fan_out', nonlinearity='relu') for a Linear
    weight of shape (out, in); returned transposed to (in, out) for x @ W."""
    std = (2.0 / out_features) ** 0.5
    w = jax.random.normal(key, (out_features, in_features), jnp.float32) * std
    return w.T


def _bn_params(num_features):
    # rows: [gamma=1, beta=0, running_mean=0, running_var=1]
    return jnp.stack([
        jnp.ones((num_features,), jnp.float32),
        jnp.zeros((num_features,), jnp.float32),
        jnp.zeros((num_features,), jnp.float32),
        jnp.ones((num_features,), jnp.float32),
    ], axis=0)


def make_params(key, input_size, hidden_size, num_classes):
    H = hidden_size
    k1, k2, k3, k4 = jax.random.split(key, 4)

    # input adapter
    bn1 = _bn_params(input_size)
    w1 = _kaiming_normal_fan_out(k1, 2 * H, input_size)          # (in, 2H)
    b1 = jnp.zeros((1, 2 * H), jnp.float32)

    # shared feature extractor
    bn2 = _bn_params(2 * H)
    w2 = _kaiming_normal_fan_out(k2, H, 2 * H)                   # (2H, H)
    b2 = jnp.zeros((1, H), jnp.float32)
    bn3 = _bn_params(H)

    # output adapter
    w3 = _kaiming_normal_fan_out(k3, H // 2, H)                  # (H, H/2)
    b3 = jnp.zeros((1, H // 2), jnp.float32)
    bn4 = _bn_params(H // 2)
    w4 = _kaiming_normal_fan_out(k4, num_classes, H // 2)        # (H/2, C)
    b4 = jnp.zeros((1, num_classes), jnp.float32)

    return (bn1, w1, b1, bn2, w2, b2, bn3, w3, b3, bn4, w4, b4)


def reference_forward(x, params):
    """Pure-JAX f32 reference (eval-mode, unfused BN) for correctness checking."""
    (bn1, w1, b1, bn2, w2, b2, bn3, w3, b3, bn4, w4, b4) = params

    def bn(x, p):
        return (x - p[2:3]) * jax.lax.rsqrt(p[3:4] + EPS) * p[0:1] + p[1:2]

    h = bn(x, bn1)
    h = jnp.maximum(h @ w1 + b1, 0.0)
    h = bn(h, bn2)
    h = jnp.maximum(h @ w2 + b2, 0.0)
    h = bn(h, bn3)
    h = jnp.maximum(h @ w3 + b3, 0.0)
    h = bn(h, bn4)
    return h @ w4 + b4


if __name__ == "__main__":
    key = jax.random.PRNGKey(0)
    kx, kp = jax.random.split(key)

    # One dataset ("ds_a"): input_size=24, hidden_size=32, num_classes=5.
    # Batch of 256 -> batch tile 128, 2 parallel grid steps (feeds both
    # TensorCores on v7x; one extra ~0.35us step on v5e/v6e).
    input_sizes = {"ds_a": 24, "ds_b": 40}
    num_classes_list = {"ds_a": 5, "ds_b": 7}
    hidden_size = 32
    batch = 256
    dataset_name = "ds_a"

    params = make_params(kp, input_sizes[dataset_name], hidden_size,
                         num_classes_list[dataset_name])
    x = jax.random.normal(kx, (batch, input_sizes[dataset_name]), jnp.float32)

    # One-time fusion / padding / bf16 cast (off the hot path).
    fused_params, num_classes = prepare_params(params)
    fused_params = jax.block_until_ready(fused_params)

    out = unified_varmax_forward(x, fused_params, num_classes)
    out = jax.block_until_ready(out)

    ref = reference_forward(x, params)
    assert out.shape == (batch, num_classes_list[dataset_name])
    # bf16 matmul path -> looser tolerance than the f32 reference.
    assert jnp.allclose(out, ref, atol=5e-2, rtol=5e-2), "mismatch vs JAX reference"

    print("KERNEL_OK")
</pallas_src>

<mosaic_0001>
module attributes {stable_mosaic.version = 11 : i64} {
  func.func @varmax_kernel(%arg0: i32, %arg1: memref<128x24xf32, #tpu.memory_space<vmem>>, %arg2: memref<24x128xbf16, #tpu.memory_space<vmem>>, %arg3: memref<1x128xf32, #tpu.memory_space<vmem>>, %arg4: memref<128x128xbf16, #tpu.memory_space<vmem>>, %arg5: memref<1x128xf32, #tpu.memory_space<vmem>>, %arg6: memref<128x128xbf16, #tpu.memory_space<vmem>>, %arg7: memref<1x128xf32, #tpu.memory_space<vmem>>, %arg8: memref<128x128xbf16, #tpu.memory_space<vmem>>, %arg9: memref<1x128xf32, #tpu.memory_space<vmem>>, %arg10: memref<128x128xf32, #tpu.memory_space<vmem>>) attributes {dimension_semantics = [#tpu.dimension_semantics<parallel>], iteration_bounds = array<i64: 2>, scalar_prefetch = 0 : i64, scratch_operands = 0 : i64, tpu.core_type = #tpu.core_type<tc>, window_params = [{transform_indices = @transform_0, window_bounds = array<i64: 128, 24>}, {pipeline_mode = #tpu.pipeline_mode<synchronous>, transform_indices = @transform_1, window_bounds = array<i64: 24, 128>}, {pipeline_mode = #tpu.pipeline_mode<synchronous>, transform_indices = @transform_2, window_bounds = array<i64: 1, 128>}, {pipeline_mode = #tpu.pipeline_mode<synchronous>, transform_indices = @transform_3, window_bounds = array<i64: 128, 128>}, {pipeline_mode = #tpu.pipeline_mode<synchronous>, transform_indices = @transform_4, window_bounds = array<i64: 1, 128>}, {pipeline_mode = #tpu.pipeline_mode<synchronous>, transform_indices = @transform_5, window_bounds = array<i64: 128, 128>}, {pipeline_mode = #tpu.pipeline_mode<synchronous>, transform_indices = @transform_6, window_bounds = array<i64: 1, 128>}, {pipeline_mode = #tpu.pipeline_mode<synchronous>, transform_indices = @transform_7, window_bounds = array<i64: 128, 128>}, {pipeline_mode = #tpu.pipeline_mode<synchronous>, transform_indices = @transform_8, window_bounds = array<i64: 1, 128>}, {transform_indices = @transform_9, window_bounds = array<i64: 128, 128>}]} {
    %c0 = arith.constant 0 : index
    %c0_0 = arith.constant 0 : index
    %0 = vector.load %arg1[%c0, %c0_0] : memref<128x24xf32, #tpu.memory_space<vmem>>, vector<128x24xf32>
    %1 = arith.truncf %0 : vector<128x24xf32> to vector<128x24xbf16>
    %c0_1 = arith.constant 0 : index
    %c0_2 = arith.constant 0 : index
    %2 = vector.load %arg2[%c0_1, %c0_2] : memref<24x128xbf16, #tpu.memory_space<vmem>>, vector<24x128xbf16>
    %cst = arith.constant dense<0.000000e+00> : vector<128x128xf32>
    %3 = tpu.matmul %1, %2, %cst {dimension_numbers = #tpu.dot_dimension_numbers<[1], [0], [0], [1], [0, 0, 1, 1], [], []>} : vector<128x24xbf16>, vector<24x128xbf16>, vector<128x128xf32> -> vector<128x128xf32>
    %c0_3 = arith.constant 0 : index
    %c0_4 = arith.constant 0 : index
    %4 = vector.load %arg3[%c0_3, %c0_4] : memref<1x128xf32, #tpu.memory_space<vmem>>, vector<1x128xf32>
    %5 = vector.broadcast %4 : vector<1x128xf32> to vector<128x128xf32>
    %6 = arith.addf %3, %5 : vector<128x128xf32>
    %cst_5 = arith.constant 0.000000e+00 : f32
    %7 = vector.broadcast %cst_5 : f32 to vector<128x128xf32>
    %8 = arith.maximumf %6, %7 : vector<128x128xf32>
    %9 = arith.truncf %8 : vector<128x128xf32> to vector<128x128xbf16>
    %c0_6 = arith.constant 0 : index
    %c0_7 = arith.constant 0 : index
    %10 = vector.load %arg4[%c0_6, %c0_7] : memref<128x128xbf16, #tpu.memory_space<vmem>>, vector<128x128xbf16>
    %cst_8 = arith.constant dense<0.000000e+00> : vector<128x128xf32>
    %11 = tpu.matmul %9, %10, %cst_8 {dimension_numbers = #tpu.dot_dimension_numbers<[1], [0], [0], [1], [0, 0, 1, 1], [], []>} : vector<128x128xbf16>, vector<128x128xbf16>, vector<128x128xf32> -> vector<128x128xf32>
    %c0_9 = arith.constant 0 : index
    %c0_10 = arith.constant 0 : index
    %12 = vector.load %arg5[%c0_9, %c0_10] : memref<1x128xf32, #tpu.memory_space<vmem>>, vector<1x128xf32>
    %13 = vector.broadcast %12 : vector<1x128xf32> to vector<128x128xf32>
    %14 = arith.addf %11, %13 : vector<128x128xf32>
    %cst_11 = arith.constant 0.000000e+00 : f32
    %15 = vector.broadcast %cst_11 : f32 to vector<128x128xf32>
    %16 = arith.maximumf %14, %15 : vector<128x128xf32>
    %17 = arith.truncf %16 : vector<128x128xf32> to vector<128x128xbf16>
    %c0_12 = arith.constant 0 : index
    %c0_13 = arith.constant 0 : index
    %18 = vector.load %arg6[%c0_12, %c0_13] : memref<128x128xbf16, #tpu.memory_space<vmem>>, vector<128x128xbf16>
    %cst_14 = arith.constant dense<0.000000e+00> : vector<128x128xf32>
    %19 = tpu.matmul %17, %18, %cst_14 {dimension_numbers = #tpu.dot_dimension_numbers<[1], [0], [0], [1], [0, 0, 1, 1], [], []>} : vector<128x128xbf16>, vector<128x128xbf16>, vector<128x128xf32> -> vector<128x128xf32>
    %c0_15 = arith.constant 0 : index
    %c0_16 = arith.constant 0 : index
    %20 = vector.load %arg7[%c0_15, %c0_16] : memref<1x128xf32, #tpu.memory_space<vmem>>, vector<1x128xf32>
    %21 = vector.broadcast %20 : vector<1x128xf32> to vector<128x128xf32>
    %22 = arith.addf %19, %21 : vector<128x128xf32>
    %cst_17 = arith.constant 0.000000e+00 : f32
    %23 = vector.broadcast %cst_17 : f32 to vector<128x128xf32>
    %24 = arith.maximumf %22, %23 : vector<128x128xf32>
    %25 = arith.truncf %24 : vector<128x128xf32> to vector<128x128xbf16>
    %c0_18 = arith.constant 0 : index
    %c0_19 = arith.constant 0 : index
    %26 = vector.load %arg8[%c0_18, %c0_19] : memref<128x128xbf16, #tpu.memory_space<vmem>>, vector<128x128xbf16>
    %cst_20 = arith.constant dense<0.000000e+00> : vector<128x128xf32>
    %27 = tpu.matmul %25, %26, %cst_20 {dimension_numbers = #tpu.dot_dimension_numbers<[1], [0], [0], [1], [0, 0, 1, 1], [], []>} : vector<128x128xbf16>, vector<128x128xbf16>, vector<128x128xf32> -> vector<128x128xf32>
    %c0_21 = arith.constant 0 : index
    %c0_22 = arith.constant 0 : index
    %28 = vector.load %arg9[%c0_21, %c0_22] : memref<1x128xf32, #tpu.memory_space<vmem>>, vector<1x128xf32>
    %29 = vector.broadcast %28 : vector<1x128xf32> to vector<128x128xf32>
    %30 = arith.addf %27, %29 : vector<128x128xf32>
    %c0_23 = arith.constant 0 : index
    %c0_24 = arith.constant 0 : index
    %31 = vector.load %arg10[%c0_23, %c0_24] : memref<128x128xf32, #tpu.memory_space<vmem>>, vector<128x128xf32>
    tpu.vector_store %arg10[%c0_23, %c0_24], %30 {strides = array<i32>} : memref<128x128xf32, #tpu.memory_space<vmem>>, vector<128x128xf32>,
    return
  }
  func.func @transform_0(%arg0: i32) -> (i32, i32) {
    %c0_i32 = arith.constant 0 : i32
    %c0_i32_0 = arith.constant 0 : i32
    return %arg0, %c0_i32 : i32, i32
  }
  func.func @transform_1(%arg0: i32) -> (i32, i32) {
    %c0_i32 = arith.constant 0 : i32
    %c0_i32_0 = arith.constant 0 : i32
    %c0_i32_1 = arith.constant 0 : i32
    return %c0_i32, %c0_i32_0 : i32, i32
  }
  func.func @transform_2(%arg0: i32) -> (i32, i32) {
    %c0_i32 = arith.constant 0 : i32
    %c0_i32_0 = arith.constant 0 : i32
    %c0_i32_1 = arith.constant 0 : i32
    return %c0_i32, %c0_i32_0 : i32, i32
  }
  func.func @transform_3(%arg0: i32) -> (i32, i32) {
    %c0_i32 = arith.constant 0 : i32
    %c0_i32_0 = arith.constant 0 : i32
    %c0_i32_1 = arith.constant 0 : i32
    return %c0_i32, %c0_i32_0 : i32, i32
  }
  func.func @transform_4(%arg0: i32) -> (i32, i32) {
    %c0_i32 = arith.constant 0 : i32
    %c0_i32_0 = arith.constant 0 : i32
    %c0_i32_1 = arith.constant 0 : i32
    return %c0_i32, %c0_i32_0 : i32, i32
  }
  func.func @transform_5(%arg0: i32) -> (i32, i32) {
    %c0_i32 = arith.constant 0 : i32
    %c0_i32_0 = arith.constant 0 : i32
    %c0_i32_1 = arith.constant 0 : i32
    return %c0_i32, %c0_i32_0 : i32, i32
  }
  func.func @transform_6(%arg0: i32) -> (i32, i32) {
    %c0_i32 = arith.constant 0 : i32
    %c0_i32_0 = arith.constant 0 : i32
    %c0_i32_1 = arith.constant 0 : i32
    return %c0_i32, %c0_i32_0 : i32, i32
  }
  func.func @transform_7(%arg0: i32) -> (i32, i32) {
    %c0_i32 = arith.constant 0 : i32
    %c0_i32_0 = arith.constant 0 : i32
    %c0_i32_1 = arith.constant 0 : i32
    return %c0_i32, %c0_i32_0 : i32, i32
  }
  func.func @transform_8(%arg0: i32) -> (i32, i32) {
    %c0_i32 = arith.constant 0 : i32
    %c0_i32_0 = arith.constant 0 : i32
    %c0_i32_1 = arith.constant 0 : i32
    return %c0_i32, %c0_i32_0 : i32, i32
  }
  func.func @transform_9(%arg0: i32) -> (i32, i32) {
    %c0_i32 = arith.constant 0 : i32
    %c0_i32_0 = arith.constant 0 : i32
    return %arg0, %c0_i32 : i32, i32
  }
}

</mosaic_0001>

<llo_original>
// kernel: tpu_custom_call.1
$region0: #{tpu_custom_call.1}
  #allocation0 [shape = 'u32[]', space=smem, size = 0x4, offset = 0x4, fixed_abs, tag = 'smem constant byte address 0x4 - core index']
  #allocation1 [shape = 'u32[72,128]{1,0:T(1,128)}', space=vmem, size = 0x9000, scoped, tag = 'internal scratch']
  %s0 = inlined_call_operand.vmem [shape: f32[256,24], index: 0, kind: input, shape index: {}]
  %s1 = inlined_call_operand.vmem [shape: bf16[24,128], index: 1, kind: input, shape index: {}]
  %s2 = inlined_call_operand.vmem [shape: f32[1,128], index: 2, kind: input, shape index: {}]
  %s3 = inlined_call_operand.vmem [shape: bf16[128,128], index: 3, kind: input, shape index: {}]
  %s4 = inlined_call_operand.vmem [shape: f32[1,128], index: 4, kind: input, shape index: {}]
  %s5 = inlined_call_operand.vmem [shape: bf16[128,128], index: 5, kind: input, shape index: {}]
  %s6 = inlined_call_operand.vmem [shape: f32[1,128], index: 6, kind: input, shape index: {}]
  %s7 = inlined_call_operand.vmem [shape: bf16[128,128], index: 7, kind: input, shape index: {}]
  %s8 = inlined_call_operand.vmem [shape: f32[1,128], index: 8, kind: input, shape index: {}]
  %s9 = inlined_call_operand.hbm [shape: f32[256,128], index: 9, kind: output, shape index: {}]
  %s10 = sld [smem:[#allocation0]]
  $region69: #{tpu_custom_call.1} parent=0
    _
  %s12 = ssub.s32 1, %s10
  %s13 = scalar_select 0, %s12, %s10
  $region1: #{tpu_custom_call.1} parent=0
    #allocation2 [shape = 'u8[131072]{0}', space=vmem, size = 0x20000, scoped, tag = 'output window, operand 0']
    #allocation3 [shape = 's32[2]{0}', space=sflag, size = 0x8, scoped, tag = 'scoped memory for tpu_custom_call.1']
    %14 = vsyncpa [#allocation3], 0
    %s15 = scalar_lea.sflag [#allocation3], 1
    %16 = vsyncpa %s15, 0
    loop: start=0, step=1, limit=4
    $region2: #{tpu_custom_call.1} parent=1 // loop_pre_header
      _
    $region3: #{tpu_custom_call.1} parent=1 // loop_header
      %s18 = sphi 0, %s22
      %p19 = scmp.ge.s32.totalorder %s18, 4
      %s28 = sphi 0, %s30
      %s31 = sphi 0, %s28
      %s32 = sphi 0, %s31
      %s48 = sphi 0, %s32
      %s52 = sphi 0, %s52
      %s54 = sphi 0, %s52
      %s55 = sphi 0, %s54
      %s69 = sphi 0, %s55
      %s73 = sphi 0, %s73
      %s75 = sphi 0, %s73
      %s76 = sphi 0, %s75
      %s90 = sphi 0, %s76
      %s94 = sphi 0, %s94
      %s96 = sphi 0, %s94
      %s97 = sphi 0, %s96
      %s111 = sphi 0, %s97
      %s115 = sphi 0, %s115
      %s117 = sphi 0, %s115
      %s118 = sphi 0, %s117
      %s132 = sphi 0, %s118
      %s136 = sphi 0, %s136
      %s138 = sphi 0, %s136
      %s139 = sphi 0, %s138
      %s153 = sphi 0, %s139
      %s157 = sphi 0, %s157
      %s159 = sphi 0, %s157
      %s160 = sphi 0, %s159
      %s174 = sphi 0, %s160
      %s178 = sphi 0, %s178
      %s180 = sphi 0, %s178
      %s181 = sphi 0, %s180
      %s195 = sphi 0, %s181
      %s199 = sphi 0, %s199
      %s201 = sphi 0, %s199
      %s202 = sphi 0, %s201
      %s216 = sphi 0, %s202
      %s222 = sphi 0, %s224
      %s225 = sphi 0, %s222
      %s226 = sphi 0, %s225
      %s242 = sphi 0, %s226
    $region4: #{tpu_custom_call.1} parent=1 // loop_header_branch
      %21 = sbr.rel (%p19) target = $region8
    $region5: #{tpu_custom_call.1} parent=1 // loop_body
      %s23 = ssub.s32 %s18, 1
      %s24 = ssub.s32 %s18, 2
      %s25 = sadd.s32 %s18, 1
      %s26 = ssub.s32 %s18, %s25
      %p27 = scmp.eq.s32.totalorder %s26, 0
      %s29 = sadd.s32 %s28, 1
      %s30 = scalar_select %p27, %s28, %s29
      %p33 = pneg %p27
      %p34 = scmp.eq.s32.totalorder %s18, 1
      %p35 = por %p33, %p34
      %p36 = scmp.ne.s32.totalorder %s28, %s31
      %p37 = scmp.eq.s32.totalorder %s18, 0
      %p38 = por %p36, %p37
      %p39 = scmp.ne.s32.totalorder %s28, %s31
      %p40 = scmp.eq.s32.totalorder %s23, 1
      %p41 = por %p39, %p40
      %p42 = scmp.ne.s32.totalorder %s31, %s32
      %p43 = scmp.eq.s32.totalorder %s23, 0
      %p44 = por %p42, %p43
      %p45 = scmp.ne.s32.totalorder %s31, %s32
      %p46 = scmp.eq.s32.totalorder %s24, 1
      %p47 = por %p45, %p46
      %p49 = scmp.ne.s32.totalorder %s32, %s48
      %p50 = scmp.eq.s32.totalorder %s24, 0
      %p51 = por %p49, %p50
      %s53 = sadd.s32 %s52, 1
      %p56 = scmp.eq.s32.totalorder %s18, 1
      %p57 = scmp.ne.s32.totalorder %s52, %s54
      %p58 = scmp.eq.s32.totalorder %s18, 0
      %p59 = por %p57, %p58
      %p60 = scmp.ne.s32.totalorder %s52, %s54
      %p61 = scmp.eq.s32.totalorder %s23, 1
      %p62 = por %p60, %p61
      %p63 = scmp.ne.s32.totalorder %s54, %s55
      %p64 = scmp.eq.s32.totalorder %s23, 0
      %p65 = por %p63, %p64
      %p66 = scmp.ne.s32.totalorder %s54, %s55
      %p67 = scmp.eq.s32.totalorder %s24, 1
      %p68 = por %p66, %p67
      %p70 = scmp.ne.s32.totalorder %s55, %s69
      %p71 = scmp.eq.s32.totalorder %s24, 0
      %p72 = por %p70, %p71
      %s74 = sadd.s32 %s73, 1
      %p77 = scmp.eq.s32.totalorder %s18, 1
      %p78 = scmp.ne.s32.totalorder %s73, %s75
      %p79 = scmp.eq.s32.totalorder %s18, 0
      %p80 = por %p78, %p79
      %p81 = scmp.ne.s32.totalorder %s73, %s75
      %p82 = scmp.eq.s32.totalorder %s23, 1
      %p83 = por %p81, %p82
      %p84 = scmp.ne.s32.totalorder %s75, %s76
      %p85 = scmp.eq.s32.totalorder %s23, 0
      %p86 = por %p84, %p85
      %p87 = scmp.ne.s32.totalorder %s75, %s76
      %p88 = scmp.eq.s32.totalorder %s24, 1
      %p89 = por %p87, %p88
      %p91 = scmp.ne.s32.totalorder %s76, %s90
      %p92 = scmp.eq.s32.totalorder %s24, 0
      %p93 = por %p91, %p92
      %s95 = sadd.s32 %s94, 1
      %p98 = scmp.eq.s32.totalorder %s18, 1
      %p99 = scmp.ne.s32.totalorder %s94, %s96
      %p100 = scmp.eq.s32.totalorder %s18, 0
      %p101 = por %p99, %p100
      %p102 = scmp.ne.s32.totalorder %s94, %s96
      %p103 = scmp.eq.s32.totalorder %s23, 1
      %p104 = por %p102, %p103
      %p105 = scmp.ne.s32.totalorder %s96, %s97
      %p106 = scmp.eq.s32.totalorder %s23, 0
      %p107 = por %p105, %p106
      %p108 = scmp.ne.s32.totalorder %s96, %s97
      %p109 = scmp.eq.s32.totalorder %s24, 1
      %p110 = por %p108, %p109
      %p112 = scmp.ne.s32.totalorder %s97, %s111
      %p113 = scmp.eq.s32.totalorder %s24, 0
      %p114 = por %p112, %p113
      %s116 = sadd.s32 %s115, 1
      %p119 = scmp.eq.s32.totalorder %s18, 1
      %p120 = scmp.ne.s32.totalorder %s115, %s117
      %p121 = scmp.eq.s32.totalorder %s18, 0
      %p122 = por %p120, %p121
      %p123 = scmp.ne.s32.totalorder %s115, %s117
      %p124 = scmp.eq.s32.totalorder %s23, 1
      %p125 = por %p123, %p124
      %p126 = scmp.ne.s32.totalorder %s117, %s118
      %p127 = scmp.eq.s32.totalorder %s23, 0
      %p128 = por %p126, %p127
      %p129 = scmp.ne.s32.totalorder %s117, %s118
      %p130 = scmp.eq.s32.totalorder %s24, 1
      %p131 = por %p129, %p130
      %p133 = scmp.ne.s32.totalorder %s118, %s132
      %p134 = scmp.eq.s32.totalorder %s24, 0
      %p135 = por %p133, %p134
      %s137 = sadd.s32 %s136, 1
      %p140 = scmp.eq.s32.totalorder %s18, 1
      %p141 = scmp.ne.s32.totalorder %s136, %s138
      %p142 = scmp.eq.s32.totalorder %s18, 0
      %p143 = por %p141, %p142
      %p144 = scmp.ne.s32.totalorder %s136, %s138
      %p145 = scmp.eq.s32.totalorder %s23, 1
      %p146 = por %p144, %p145
      %p147 = scmp.ne.s32.totalorder %s138, %s139
      %p148 = scmp.eq.s32.totalorder %s23, 0
      %p149 = por %p147, %p148
      %p150 = scmp.ne.s32.totalorder %s138, %s139
      %p151 = scmp.eq.s32.totalorder %s24, 1
      %p152 = por %p150, %p151
      %p154 = scmp.ne.s32.totalorder %s139, %s153
      %p155 = scmp.eq.s32.totalorder %s24, 0
      %p156 = por %p154, %p155
      %s158 = sadd.s32 %s157, 1
      %p161 = scmp.eq.s32.totalorder %s18, 1
      %p162 = scmp.ne.s32.totalorder %s157, %s159
      %p163 = scmp.eq.s32.totalorder %s18, 0
      %p164 = por %p162, %p163
      %p165 = scmp.ne.s32.totalorder %s157, %s159
      %p166 = scmp.eq.s32.totalorder %s23, 1
      %p167 = por %p165, %p166
      %p168 = scmp.ne.s32.totalorder %s159, %s160
      %p169 = scmp.eq.s32.totalorder %s23, 0
      %p170 = por %p168, %p169
      %p171 = scmp.ne.s32.totalorder %s159, %s160
      %p172 = scmp.eq.s32.totalorder %s24, 1
      %p173 = por %p171, %p172
      %p175 = scmp.ne.s32.totalorder %s160, %s174
      %p176 = scmp.eq.s32.totalorder %s24, 0
      %p177 = por %p175, %p176
      %s179 = sadd.s32 %s178, 1
      %p182 = scmp.eq.s32.totalorder %s18, 1
      %p183 = scmp.ne.s32.totalorder %s178, %s180
      %p184 = scmp.eq.s32.totalorder %s18, 0
      %p185 = por %p183, %p184
      %p186 = scmp.ne.s32.totalorder %s178, %s180
      %p187 = scmp.eq.s32.totalorder %s23, 1
      %p188 = por %p186, %p187
      %p189 = scmp.ne.s32.totalorder %s180, %s181
      %p190 = scmp.eq.s32.totalorder %s23, 0
      %p191 = por %p189, %p190
      %p192 = scmp.ne.s32.totalorder %s180, %s181
      %p193 = scmp.eq.s32.totalorder %s24, 1
      %p194 = por %p192, %p193
      %p196 = scmp.ne.s32.totalorder %s181, %s195
      %p197 = scmp.eq.s32.totalorder %s24, 0
      %p198 = por %p196, %p197
      %s200 = sadd.s32 %s199, 1
      %p203 = scmp.eq.s32.totalorder %s18, 1
      %p204 = scmp.ne.s32.totalorder %s199, %s201
      %p205 = scmp.eq.s32.totalorder %s18, 0
      %p206 = por %p204, %p205
      %p207 = scmp.ne.s32.totalorder %s199, %s201
      %p208 = scmp.eq.s32.totalorder %s23, 1
      %p209 = por %p207, %p208
      %p210 = scmp.ne.s32.totalorder %s201, %s202
      %p211 = scmp.eq.s32.totalorder %s23, 0
      %p212 = por %p210, %p211
      %p213 = scmp.ne.s32.totalorder %s201, %s202
      %p214 = scmp.eq.s32.totalorder %s24, 1
      %p215 = por %p213, %p214
      %p217 = scmp.ne.s32.totalorder %s202, %s216
      %p218 = scmp.eq.s32.totalorder %s24, 0
      %p219 = por %p217, %p218
      %s220 = ssub.s32 %s18, %s25
      %p221 = scmp.eq.s32.totalorder %s220, 0
      %s223 = sadd.s32 %s222, 1
      %s224 = scalar_select %p221, %s222, %s223
      %p227 = pneg %p221
      %p228 = scmp.eq.s32.totalorder %s18, 1
      %p229 = por %p227, %p228
      %p230 = scmp.ne.s32.totalorder %s222, %s225
      %p231 = scmp.eq.s32.totalorder %s18, 0
      %p232 = por %p230, %p231
      %p233 = scmp.ne.s32.totalorder %s222, %s225
      %p234 = scmp.eq.s32.totalorder %s23, 1
      %p235 = por %p233, %p234
      %p236 = scmp.ne.s32.totalorder %s225, %s226
      %p237 = scmp.eq.s32.totalorder %s23, 0
      %p238 = por %p236, %p237
      %p239 = scmp.ne.s32.totalorder %s225, %s226
      %p240 = scmp.eq.s32.totalorder %s24, 1
      %p241 = por %p239, %p240
      %p243 = scmp.ne.s32.totalorder %s226, %s242
      %p244 = scmp.eq.s32.totalorder %s24, 0
      %p245 = por %p243, %p244
      %p246 = scmp.le.s32.totalorder 1, %s18
      %p247 = scmp.lt.s32.totalorder %s18, 3
      %p248 = pnand %p246, %p247
      %p249 = pneg %p248
      // Predicated region
      $region9: #{tpu_custom_call.1} parent=5 // pred_check
        _
      $region10: #{tpu_custom_call.1} parent=5 // pred_check_branch
        %251 = sbr.rel (%p248) target = $region12
      $region11: #{tpu_custom_call.1} parent=5 // pred_region
        %s252 = ssub.s32 %s18, 1
        // Predicated region
        $region13: #{tpu_custom_call.1} parent=11 // pred_check
          %p253 = pneg %p65
        $region14: #{tpu_custom_call.1} parent=11 // pred_check_branch
          %255 = sbr.rel (%p253) target = $region16
        $region15: #{tpu_custom_call.1} parent=11 // pred_region
          _
        $region16: #{tpu_custom_call.1} parent=11 // pred_fallthru
          _
        // Predicated region
        $region17: #{tpu_custom_call.1} parent=11 // pred_check
          %p256 = pneg %p86
        $region18: #{tpu_custom_call.1} parent=11 // pred_check_branch
          %258 = sbr.rel (%p256) target = $region20
        $region19: #{tpu_custom_call.1} parent=11 // pred_region
          _
        $region20: #{tpu_custom_call.1} parent=11 // pred_fallthru
          _
        // Predicated region
        $region21: #{tpu_custom_call.1} parent=11 // pred_check
          %p259 = pneg %p107
        $region22: #{tpu_custom_call.1} parent=11 // pred_check_branch
          %261 = sbr.rel (%p259) target = $region24
        $region23: #{tpu_custom_call.1} parent=11 // pred_region
          _
        $region24: #{tpu_custom_call.1} parent=11 // pred_fallthru
          _
        // Predicated region
        $region25: #{tpu_custom_call.1} parent=11 // pred_check
          %p262 = pneg %p128
        $region26: #{tpu_custom_call.1} parent=11 // pred_check_branch
          %264 = sbr.rel (%p262) target = $region28
        $region27: #{tpu_custom_call.1} parent=11 // pred_region
          _
        $region28: #{tpu_custom_call.1} parent=11 // pred_fallthru
          _
        // Predicated region
        $region29: #{tpu_custom_call.1} parent=11 // pred_check
          %p265 = pneg %p149
        $region30: #{tpu_custom_call.1} parent=11 // pred_check_branch
          %267 = sbr.rel (%p265) target = $region32
        $region31: #{tpu_custom_call.1} parent=11 // pred_region
          _
        $region32: #{tpu_custom_call.1} parent=11 // pred_fallthru
          _
        // Predicated region
        $region33: #{tpu_custom_call.1} parent=11 // pred_check
          %p268 = pneg %p170
        $region34: #{tpu_custom_call.1} parent=11 // pred_check_branch
          %270 = sbr.rel (%p268) target = $region36
        $region35: #{tpu_custom_call.1} parent=11 // pred_region
          _
        $region36: #{tpu_custom_call.1} parent=11 // pred_fallthru
          _
        // Predicated region
        $region37: #{tpu_custom_call.1} parent=11 // pred_check
          %p271 = pneg %p191
        $region38: #{tpu_custom_call.1} parent=11 // pred_check_branch
          %273 = sbr.rel (%p271) target = $region40
        $region39: #{tpu_custom_call.1} parent=11 // pred_region
          _
        $region40: #{tpu_custom_call.1} parent=11 // pred_fallthru
          _
        // Predicated region
        $region41: #{tpu_custom_call.1} parent=11 // pred_check
          %p274 = pneg %p212
        $region42: #{tpu_custom_call.1} parent=11 // pred_check_branch
          %276 = sbr.rel (%p274) target = $region44
        $region43: #{tpu_custom_call.1} parent=11 // pred_region
          _
        $region44: #{tpu_custom_call.1} parent=11 // pred_fallthru
          _
      $region12: #{tpu_custom_call.1} parent=5 // pred_fallthru
        _
      %p277 = scmp.lt.s32.totalorder %s18, 2
      // Predicated region
      $region45: #{tpu_custom_call.1} parent=5 // pred_check
        %p278 = pneg %p277
      $region46: #{tpu_custom_call.1} parent=5 // pred_check_branch
        %280 = sbr.rel (%p278) target = $region48
      $region47: #{tpu_custom_call.1} parent=5 // pred_region
        // Predicated region
        $region49: #{tpu_custom_call.1} parent=47 // pred_check
          %p281 = pneg %p38
        $region50: #{tpu_custom_call.1} parent=47 // pred_check_branch
          %283 = sbr.rel (%p281) target = $region52
        $region51: #{tpu_custom_call.1} parent=47 // pred_region
          %s284 = smul.u32 16, %s18
          %p285 = scmp.lt.s32.totalorder %s284, 31
          %s286 = scalar_select %p285, %s284, 31
          %s287 = smul.addr %s286, 8
          %s288 = scalar_lea.vmem %s0, %s287
          %s289 = smul.u32 16, %s18
        $region52: #{tpu_custom_call.1} parent=47 // pred_fallthru
          _
      $region48: #{tpu_custom_call.1} parent=5 // pred_fallthru
        _
      %p290 = scmp.le.s32.totalorder 1, %s18
      %p291 = scmp.lt.s32.totalorder %s18, 3
      %p292 = pnand %p290, %p291
      %p293 = pneg %p292
      // Predicated region
      $region53: #{tpu_custom_call.1} parent=5 // pred_check
        _
      $region54: #{tpu_custom_call.1} parent=5 // pred_check_branch
        %295 = sbr.rel (%p292) target = $region56
      $region55: #{tpu_custom_call.1} parent=5 // pred_region
        %s296 = ssub.s32 %s18, 1
        %s297 = smul.u32 16, %s23
        %p298 = scmp.lt.s32.totalorder %s297, 31
        %s299 = scalar_select %p298, %s297, 31
        %s300 = smul.addr %s299, 8
        %s301 = scalar_lea.vmem %s0, %s300
        %p302 = pneg %p44
        %p303 = pneg %p41
        %p304 = pneg %p65
        %p305 = pneg %p62
        %p306 = pneg %p86
        %p307 = pneg %p83
        %p308 = pneg %p107
        %p309 = pneg %p104
        %p310 = pneg %p128
        %p311 = pneg %p125
        %p312 = pneg %p149
        %p313 = pneg %p146
        %p314 = pneg %p170
        %p315 = pneg %p167
        %p316 = pneg %p191
        %p317 = pneg %p188
        %p318 = pneg %p212
        %p319 = pneg %p209
        %p320 = pneg %p238
        %p321 = pneg %p235
        %s322 = sand.u32 %s225, 1
        %s323 = scalar_lea.sflag [#allocation3], %s322
        %s324 = sand.u32 %s225, 1
        %s325 = smul.addr %s324, 128
        %s326 = scalar_lea.vmem [#allocation2], %s325
        %s327 = smul.u32 16, %s23
        %p328 = scmp.lt.s32.totalorder %s327, 31
        %s329 = scalar_select %p328, %s327, 31
        %s330 = smul.addr %s329, 8
        %s331 = scalar_lea.vmem %s0, %s330
        %s332 = smul.u32 16, %s23
        %s333 = smul.u32 16, %s23
        %v335 = vld [vmem:[%s331] sm:$0xff]
        %v336 = vld [vmem:[%s331 + $0x8] sm:$0xff]
        %v337 = vld [vmem:[%s331 + $0x10] sm:$0xff]
        %v338 = vld [vmem:[%s331 + $0x18] sm:$0xff]
        %v339 = vld [vmem:[%s331 + $0x20] sm:$0xff]
        %v340 = vld [vmem:[%s331 + $0x28] sm:$0xff]
        %v341 = vld [vmem:[%s331 + $0x30] sm:$0xff]
        %v342 = vld [vmem:[%s331 + $0x38] sm:$0xff]
        %v343 = vld [vmem:[%s331 + $0x40] sm:$0xff]
        %v344 = vld [vmem:[%s331 + $0x48] sm:$0xff]
        %v345 = vld [vmem:[%s331 + $0x50] sm:$0xff]
        %v346 = vld [vmem:[%s331 + $0x58] sm:$0xff]
        %v347 = vld [vmem:[%s331 + $0x60] sm:$0xff]
        %v348 = vld [vmem:[%s331 + $0x68] sm:$0xff]
        %v349 = vld [vmem:[%s331 + $0x70] sm:$0xff]
        %v350 = vld [vmem:[%s331 + $0x78] sm:$0xff]
        %v351 = vpack.c.bf16 %v336, %v335
        %v352 = vpack.c.bf16 %v338, %v337
        %v353 = vpack.c.bf16 %v340, %v339
        %v354 = vpack.c.bf16 %v342, %v341
        %v355 = vpack.c.bf16 %v344, %v343
        %v356 = vpack.c.bf16 %v346, %v345
        %v357 = vpack.c.bf16 %v348, %v347
        %v358 = vpack.c.bf16 %v350, %v349
        %v359 = vld [vmem:[%s1] sm:$0xf]
        %v360 = vld [vmem:[%s1 + $0x4] sm:$0xf]
        %v361 = vld [vmem:[%s1 + $0x8] sm:$0xf]
        %v362 = vld [vmem:[%s2] sm:$0x1]
        %v364 = vperm.slane %v362, 0
        %v369 = vunpack.c.l.b16 %v359
        %v370 = vunpack.c.l.b16 %v360
        %v371 = vunpack.c.l.b16 %v361
        %v372 = vpack.c.b16 %v370, %v369
        %v373 = vpack.c.b16 %v371, %v371
        %vm375 = vcmask 195584
        %v377 = vsel %vm375, %v351, 0
        %v380 = vsel %vm375, %v352, 0
        %v383 = vsel %vm375, %v353, 0
        %v386 = vsel %vm375, %v354, 0
        %v389 = vsel %vm375, %v355, 0
        %v392 = vsel %vm375, %v356, 0
        %v395 = vsel %vm375, %v357, 0
        %v398 = vsel %vm375, %v358, 0
        %vm400 = vcmask 1043456
        %v402 = vsel %vm400, %v373, 0
        %404 = vmatpush.bf16.msra.mxu0 0
        %405 = vmatpush.bf16.msra.mxu0 0
        %406 = vmatpush.bf16.msra.mxu0 0
        %407 = vmatpush.bf16.msra.mxu0 0
        %408 = vmatpush.bf16.msra.mxu0 0
        %409 = vmatpush.bf16.msra.mxu0 0
        %410 = vmatpush.bf16.msra.mxu0 %v402
        %411 = vmatpush.bf16.msra.mxu0 %v372
        %412 = vmatmul.bf16.gmra.mxu0 %v377
        %v413 = vpop.f32.mrf.mxu0
        %v414 = vadd.f32 %v364, %v413
        %v415 = vpop.f32.mrf.mxu0
        %v416 = vadd.f32 %v364, %v415
        %417 = vmatmul.bf16.gmra.mxu0 %v380
        %v418 = vpop.f32.mrf.mxu0
        %v419 = vadd.f32 %v364, %v418
        %v420 = vpop.f32.mrf.mxu0
        %v421 = vadd.f32 %v364, %v420
        %422 = vmatmul.bf16.gmra.mxu0 %v383
        %v423 = vpop.f32.mrf.mxu0
        %v424 = vadd.f32 %v364, %v423
        %v425 = vpop.f32.mrf.mxu0
        %v426 = vadd.f32 %v364, %v425
        %427 = vmatmul.bf16.gmra.mxu0 %v386
        %v428 = vpop.f32.mrf.mxu0
        %v429 = vadd.f32 %v364, %v428
        %v430 = vpop.f32.mrf.mxu0
        %v431 = vadd.f32 %v364, %v430
        %432 = vmatmul.bf16.gmra.mxu0 %v389
        %v433 = vpop.f32.mrf.mxu0
        %v434 = vadd.f32 %v364, %v433
        %v435 = vpop.f32.mrf.mxu0
        %v436 = vadd.f32 %v364, %v435
        %437 = vmatmul.bf16.gmra.mxu0 %v392
        %v438 = vpop.f32.mrf.mxu0
        %v439 = vadd.f32 %v364, %v438
        %v440 = vpop.f32.mrf.mxu0
        %v441 = vadd.f32 %v364, %v440
        %442 = vmatmul.bf16.gmra.mxu0 %v395
        %v443 = vpop.f32.mrf.mxu0
        %v444 = vadd.f32 %v364, %v443
        %v445 = vpop.f32.mrf.mxu0
        %v446 = vadd.f32 %v364, %v445
        %447 = vmatmul.bf16.gmra.mxu0 %v398
        %v448 = vpop.f32.mrf.mxu0
        %v449 = vadd.f32 %v364, %v448
        %v450 = vpop.f32.mrf.mxu0
        %v451 = vadd.f32 %v364, %v450
        %452 = vdwg.mxu0
        %v453 = vmax.f32 %v414, 0.0
        %v454 = vmax.f32 %v416, 0.0
        %v455 = vmax.f32 %v419, 0.0
        %v456 = vmax.f32 %v421, 0.0
        %v457 = vmax.f32 %v424, 0.0
        %v458 = vmax.f32 %v426, 0.0
        %v459 = vmax.f32 %v429, 0.0
        %v460 = vmax.f32 %v431, 0.0
        %v461 = vmax.f32 %v434, 0.0
        %v462 = vmax.f32 %v436, 0.0
        %v463 = vmax.f32 %v439, 0.0
        %v464 = vmax.f32 %v441, 0.0
        %v465 = vmax.f32 %v444, 0.0
        %v466 = vmax.f32 %v446, 0.0
        %v467 = vmax.f32 %v449, 0.0
        %v468 = vmax.f32 %v451, 0.0
        %v469 = vpack.c.bf16 %v454, %v453
        %v470 = vpack.c.bf16 %v456, %v455
        %v471 = vpack.c.bf16 %v458, %v457
        %v472 = vpack.c.bf16 %v460, %v459
        %v473 = vpack.c.bf16 %v462, %v461
        %v474 = vpack.c.bf16 %v464, %v463
        %v475 = vpack.c.bf16 %v466, %v465
        %v476 = vpack.c.bf16 %v468, %v467
        %v477 = vld [vmem:[%s3] sm:$0xf]
        %v478 = vld [vmem:[%s3 + $0x4] sm:$0xf]
        %v479 = vld [vmem:[%s3 + $0x8] sm:$0xf]
        %v480 = vld [vmem:[%s3 + $0xc] sm:$0xf]
        %v481 = vld [vmem:[%s3 + $0x10] sm:$0xf]
        %v482 = vld [vmem:[%s3 + $0x14] sm:$0xf]
        %v483 = vld [vmem:[%s3 + $0x18] sm:$0xf]
        %v484 = vld [vmem:[%s3 + $0x1c] sm:$0xf]
        %v485 = vld [vmem:[%s3 + $0x20] sm:$0xf]
        %v486 = vld [vmem:[%s3 + $0x24] sm:$0xf]
        %v487 = vld [vmem:[%s3 + $0x28] sm:$0xf]
        %v488 = vld [vmem:[%s3 + $0x2c] sm:$0xf]
        %v489 = vld [vmem:[%s3 + $0x30] sm:$0xf]
        %v490 = vld [vmem:[%s3 + $0x34] sm:$0xf]
        %v491 = vld [vmem:[%s3 + $0x38] sm:$0xf]
        %v492 = vld [vmem:[%s3 + $0x3c] sm:$0xf]
        %v493 = vld [vmem:[%s4] sm:$0x1]
        %v495 = vperm.slane %v493, 0
        %v513 = vunpack.c.l.b16 %v477
        %v514 = vunpack.c.l.b16 %v478
        %v515 = vunpack.c.l.b16 %v479
        %v516 = vunpack.c.l.b16 %v480
        %v517 = vunpack.c.l.b16 %v481
        %v518 = vunpack.c.l.b16 %v482
        %v519 = vunpack.c.l.b16 %v483
        %v520 = vunpack.c.l.b16 %v484
        %v521 = vunpack.c.l.b16 %v485
        %v522 = vunpack.c.l.b16 %v486
        %v523 = vunpack.c.l.b16 %v487
        %v524 = vunpack.c.l.b16 %v488
        %v525 = vunpack.c.l.b16 %v489
        %v526 = vunpack.c.l.b16 %v490
        %v527 = vunpack.c.l.b16 %v491
        %v528 = vunpack.c.l.b16 %v492
        %v529 = vpack.c.b16 %v514, %v513
        %v530 = vpack.c.b16 %v516, %v515
        %v531 = vpack.c.b16 %v518, %v517
        %v532 = vpack.c.b16 %v520, %v519
        %v533 = vpack.c.b16 %v522, %v521
        %v534 = vpack.c.b16 %v524, %v523
        %v535 = vpack.c.b16 %v526, %v525
        %v536 = vpack.c.b16 %v528, %v527
        %545 = vmatpush.bf16.msra.mxu0 %v536
        %546 = vmatpush.bf16.msra.mxu0 %v535
        %547 = vmatpush.bf16.msra.mxu0 %v534
        %548 = vmatpush.bf16.msra.mxu0 %v533
        %549 = vmatpush.bf16.msra.mxu0 %v532
        %550 = vmatpush.bf16.msra.mxu0 %v531
        %551 = vmatpush.bf16.msra.mxu0 %v530
        %552 = vmatpush.bf16.msra.mxu0 %v529
        %553 = vmatmul.bf16.gmra.mxu0 %v469
        %v554 = vpop.f32.mrf.mxu0
        %v555 = vadd.f32 %v495, %v554
        %v556 = vpop.f32.mrf.mxu0
        %v557 = vadd.f32 %v495, %v556
        %558 = vmatmul.bf16.gmra.mxu0 %v470
        %v559 = vpop.f32.mrf.mxu0
        %v560 = vadd.f32 %v495, %v559
        %v561 = vpop.f32.mrf.mxu0
        %v562 = vadd.f32 %v495, %v561
        %563 = vmatmul.bf16.gmra.mxu0 %v471
        %v564 = vpop.f32.mrf.mxu0
        %v565 = vadd.f32 %v495, %v564
        %v566 = vpop.f32.mrf.mxu0
        %v567 = vadd.f32 %v495, %v566
        %568 = vmatmul.bf16.gmra.mxu0 %v472
        %v569 = vpop.f32.mrf.mxu0
        %v570 = vadd.f32 %v495, %v569
        %v571 = vpop.f32.mrf.mxu0
        %v572 = vadd.f32 %v495, %v571
        %573 = vmatmul.bf16.gmra.mxu0 %v473
        %v574 = vpop.f32.mrf.mxu0
        %v575 = vadd.f32 %v495, %v574
        %v576 = vpop.f32.mrf.mxu0
        %v577 = vadd.f32 %v495, %v576
        %578 = vmatmul.bf16.gmra.mxu0 %v474
        %v579 = vpop.f32.mrf.mxu0
        %v580 = vadd.f32 %v495, %v579
        %v581 = vpop.f32.mrf.mxu0
        %v582 = vadd.f32 %v495, %v581
        %583 = vmatmul.bf16.gmra.mxu0 %v475
        %v584 = vpop.f32.mrf.mxu0
        %v585 = vadd.f32 %v495, %v584
        %v586 = vpop.f32.mrf.mxu0
        %v587 = vadd.f32 %v495, %v586
        %588 = vmatmul.bf16.gmra.mxu0 %v476
        %v589 = vpop.f32.mrf.mxu0
        %v590 = vadd.f32 %v495, %v589
        %v591 = vpop.f32.mrf.mxu0
        %v592 = vadd.f32 %v495, %v591
        %593 = vdwg.mxu0
        %v594 = vmax.f32 %v555, 0.0
        %v595 = vmax.f32 %v557, 0.0
        %v596 = vmax.f32 %v560, 0.0
        %v597 = vmax.f32 %v562, 0.0
        %v598 = vmax.f32 %v565, 0.0
        %v599 = vmax.f32 %v567, 0.0
        %v600 = vmax.f32 %v570, 0.0
        %v601 = vmax.f32 %v572, 0.0
        %v602 = vmax.f32 %v575, 0.0
        %v603 = vmax.f32 %v577, 0.0
        %v604 = vmax.f32 %v580, 0.0
        %v605 = vmax.f32 %v582, 0.0
        %v606 = vmax.f32 %v585, 0.0
        %v607 = vmax.f32 %v587, 0.0
        %v608 = vmax.f32 %v590, 0.0
        %v609 = vmax.f32 %v592, 0.0
        %v610 = vpack.c.bf16 %v595, %v594
        %v611 = vpack.c.bf16 %v597, %v596
        %v612 = vpack.c.bf16 %v599, %v598
        %v613 = vpack.c.bf16 %v601, %v600
        %v614 = vpack.c.bf16 %v603, %v602
        %v615 = vpack.c.bf16 %v605, %v604
        %v616 = vpack.c.bf16 %v607, %v606
        %v617 = vpack.c.bf16 %v609, %v608
        %v618 = vld [vmem:[%s5] sm:$0xf]
        %v619 = vld [vmem:[%s5 + $0x4] sm:$0xf]
        %v620 = vld [vmem:[%s5 + $0x8] sm:$0xf]
        %v621 = vld [vmem:[%s5 + $0xc] sm:$0xf]
        %v622 = vld [vmem:[%s5 + $0x10] sm:$0xf]
        %v623 = vld [vmem:[%s5 + $0x14] sm:$0xf]
        %v624 = vld [vmem:[%s5 + $0x18] sm:$0xf]
        %v625 = vld [vmem:[%s5 + $0x1c] sm:$0xf]
        %v626 = vld [vmem:[%s5 + $0x20] sm:$0xf]
        %v627 = vld [vmem:[%s5 + $0x24] sm:$0xf]
        %v628 = vld [vmem:[%s5 + $0x28] sm:$0xf]
        %v629 = vld [vmem:[%s5 + $0x2c] sm:$0xf]
        %v630 = vld [vmem:[%s5 + $0x30] sm:$0xf]
        %v631 = vld [vmem:[%s5 + $0x34] sm:$0xf]
        %v632 = vld [vmem:[%s5 + $0x38] sm:$0xf]
        %v633 = vld [vmem:[%s5 + $0x3c] sm:$0xf]
        %v634 = vld [vmem:[%s6] sm:$0x1]
        %v636 = vperm.slane %v634, 0
        %v654 = vunpack.c.l.b16 %v618
        %v655 = vunpack.c.l.b16 %v619
        %v656 = vunpack.c.l.b16 %v620
        %v657 = vunpack.c.l.b16 %v621
        %v658 = vunpack.c.l.b16 %v622
        %v659 = vunpack.c.l.b16 %v623
        %v660 = vunpack.c.l.b16 %v624
        %v661 = vunpack.c.l.b16 %v625
        %v662 = vunpack.c.l.b16 %v626
        %v663 = vunpack.c.l.b16 %v627
        %v664 = vunpack.c.l.b16 %v628
        %v665 = vunpack.c.l.b16 %v629
        %v666 = vunpack.c.l.b16 %v630
        %v667 = vunpack.c.l.b16 %v631
        %v668 = vunpack.c.l.b16 %v632
        %v669 = vunpack.c.l.b16 %v633
        %v670 = vpack.c.b16 %v655, %v654
        %v671 = vpack.c.b16 %v657, %v656
        %v672 = vpack.c.b16 %v659, %v658
        %v673 = vpack.c.b16 %v661, %v660
        %v674 = vpack.c.b16 %v663, %v662
        %v675 = vpack.c.b16 %v665, %v664
        %v676 = vpack.c.b16 %v667, %v666
        %v677 = vpack.c.b16 %v669, %v668
        %686 = vmatpush.bf16.msra.mxu0 %v677
        %687 = vmatpush.bf16.msra.mxu0 %v676
        %688 = vmatpush.bf16.msra.mxu0 %v675
        %689 = vmatpush.bf16.msra.mxu0 %v674
        %690 = vmatpush.bf16.msra.mxu0 %v673
        %691 = vmatpush.bf16.msra.mxu0 %v672
        %692 = vmatpush.bf16.msra.mxu0 %v671
        %693 = vmatpush.bf16.msra.mxu0 %v670
        %694 = vmatmul.bf16.gmra.mxu0 %v610
        %v695 = vpop.f32.mrf.mxu0
        %v696 = vadd.f32 %v636, %v695
        %v697 = vpop.f32.mrf.mxu0
        %v698 = vadd.f32 %v636, %v697
        %699 = vmatmul.bf16.gmra.mxu0 %v611
        %v700 = vpop.f32.mrf.mxu0
        %v701 = vadd.f32 %v636, %v700
        %v702 = vpop.f32.mrf.mxu0
        %v703 = vadd.f32 %v636, %v702
        %704 = vmatmul.bf16.gmra.mxu0 %v612
        %v705 = vpop.f32.mrf.mxu0
        %v706 = vadd.f32 %v636, %v705
        %v707 = vpop.f32.mrf.mxu0
        %v708 = vadd.f32 %v636, %v707
        %709 = vmatmul.bf16.gmra.mxu0 %v613
        %v710 = vpop.f32.mrf.mxu0
        %v711 = vadd.f32 %v636, %v710
        %v712 = vpop.f32.mrf.mxu0
        %v713 = vadd.f32 %v636, %v712
        %714 = vmatmul.bf16.gmra.mxu0 %v614
        %v715 = vpop.f32.mrf.mxu0
        %v716 = vadd.f32 %v636, %v715
        %v717 = vpop.f32.mrf.mxu0
        %v718 = vadd.f32 %v636, %v717
        %719 = vmatmul.bf16.gmra.mxu0 %v615
        %v720 = vpop.f32.mrf.mxu0
        %v721 = vadd.f32 %v636, %v720
        %v722 = vpop.f32.mrf.mxu0
        %v723 = vadd.f32 %v636, %v722
        %724 = vmatmul.bf16.gmra.mxu0 %v616
        %v725 = vpop.f32.mrf.mxu0
        %v726 = vadd.f32 %v636, %v725
        %v727 = vpop.f32.mrf.mxu0
        %v728 = vadd.f32 %v636, %v727
        %729 = vmatmul.bf16.gmra.mxu0 %v617
        %v730 = vpop.f32.mrf.mxu0
        %v731 = vadd.f32 %v636, %v730
        %v732 = vpop.f32.mrf.mxu0
        %v733 = vadd.f32 %v636, %v732
        %734 = vdwg.mxu0
        %v735 = vmax.f32 %v696, 0.0
        %v736 = vmax.f32 %v698, 0.0
        %v737 = vmax.f32 %v701, 0.0
        %v738 = vmax.f32 %v703, 0.0
        %v739 = vmax.f32 %v706, 0.0
        %v740 = vmax.f32 %v708, 0.0
        %v741 = vmax.f32 %v711, 0.0
        %v742 = vmax.f32 %v713, 0.0
        %v743 = vmax.f32 %v716, 0.0
        %v744 = vmax.f32 %v718, 0.0
        %v745 = vmax.f32 %v721, 0.0
        %v746 = vmax.f32 %v723, 0.0
        %v747 = vmax.f32 %v726, 0.0
        %v748 = vmax.f32 %v728, 0.0
        %v749 = vmax.f32 %v731, 0.0
        %v750 = vmax.f32 %v733, 0.0
        %v751 = vpack.c.bf16 %v736, %v735
        %v752 = vpack.c.bf16 %v738, %v737
        %v753 = vpack.c.bf16 %v740, %v739
        %v754 = vpack.c.bf16 %v742, %v741
        %v755 = vpack.c.bf16 %v744, %v743
        %v756 = vpack.c.bf16 %v746, %v745
        %v757 = vpack.c.bf16 %v748, %v747
        %v758 = vpack.c.bf16 %v750, %v749
        %v759 = vld [vmem:[%s7] sm:$0xf]
        %v760 = vld [vmem:[%s7 + $0x4] sm:$0xf]
        %v761 = vld [vmem:[%s7 + $0x8] sm:$0xf]
        %v762 = vld [vmem:[%s7 + $0xc] sm:$0xf]
        %v763 = vld [vmem:[%s7 + $0x10] sm:$0xf]
        %v764 = vld [vmem:[%s7 + $0x14] sm:$0xf]
        %v765 = vld [vmem:[%s7 + $0x18] sm:$0xf]
        %v766 = vld [vmem:[%s7 + $0x1c] sm:$0xf]
        %v767 = vld [vmem:[%s7 + $0x20] sm:$0xf]
        %v768 = vld [vmem:[%s7 + $0x24] sm:$0xf]
        %v769 = vld [vmem:[%s7 + $0x28] sm:$0xf]
        %v770 = vld [vmem:[%s7 + $0x2c] sm:$0xf]
        %v771 = vld [vmem:[%s7 + $0x30] sm:$0xf]
        %v772 = vld [vmem:[%s7 + $0x34] sm:$0xf]
        %v773 = vld [vmem:[%s7 + $0x38] sm:$0xf]
        %v774 = vld [vmem:[%s7 + $0x3c] sm:$0xf]
        %v775 = vld [vmem:[%s8] sm:$0x1]
        %v777 = vperm.slane %v775, 0
        %v795 = vunpack.c.l.b16 %v759
        %v796 = vunpack.c.l.b16 %v760
        %v797 = vunpack.c.l.b16 %v761
        %v798 = vunpack.c.l.b16 %v762
        %v799 = vunpack.c.l.b16 %v763
        %v800 = vunpack.c.l.b16 %v764
        %v801 = vunpack.c.l.b16 %v765
        %v802 = vunpack.c.l.b16 %v766
        %v803 = vunpack.c.l.b16 %v767
        %v804 = vunpack.c.l.b16 %v768
        %v805 = vunpack.c.l.b16 %v769
        %v806 = vunpack.c.l.b16 %v770
        %v807 = vunpack.c.l.b16 %v771
        %v808 = vunpack.c.l.b16 %v772
        %v809 = vunpack.c.l.b16 %v773
        %v810 = vunpack.c.l.b16 %v774
        %v811 = vpack.c.b16 %v796, %v795
        %v812 = vpack.c.b16 %v798, %v797
        %v813 = vpack.c.b16 %v800, %v799
        %v814 = vpack.c.b16 %v802, %v801
        %v815 = vpack.c.b16 %v804, %v803
        %v816 = vpack.c.b16 %v806, %v805
        %v817 = vpack.c.b16 %v808, %v807
        %v818 = vpack.c.b16 %v810, %v809
        %827 = vmatpush.bf16.msra.mxu0 %v818
        %828 = vmatpush.bf16.msra.mxu0 %v817
        %829 = vmatpush.bf16.msra.mxu0 %v816
        %830 = vmatpush.bf16.msra.mxu0 %v815
        %831 = vmatpush.bf16.msra.mxu0 %v814
        %832 = vmatpush.bf16.msra.mxu0 %v813
        %833 = vmatpush.bf16.msra.mxu0 %v812
        %834 = vmatpush.bf16.msra.mxu0 %v811
        %835 = vmatmul.bf16.gmra.mxu0 %v751
        %v836 = vpop.f32.mrf.mxu0
        %v837 = vadd.f32 %v777, %v836
        %v838 = vpop.f32.mrf.mxu0
        %v839 = vadd.f32 %v777, %v838
        %840 = vmatmul.bf16.gmra.mxu0 %v752
        %v841 = vpop.f32.mrf.mxu0
        %v842 = vadd.f32 %v777, %v841
        %v843 = vpop.f32.mrf.mxu0
        %v844 = vadd.f32 %v777, %v843
        %845 = vmatmul.bf16.gmra.mxu0 %v753
        %v846 = vpop.f32.mrf.mxu0
        %v847 = vadd.f32 %v777, %v846
        %v848 = vpop.f32.mrf.mxu0
        %v849 = vadd.f32 %v777, %v848
        %850 = vmatmul.bf16.gmra.mxu0 %v754
        %v851 = vpop.f32.mrf.mxu0
        %v852 = vadd.f32 %v777, %v851
        %v853 = vpop.f32.mrf.mxu0
        %v854 = vadd.f32 %v777, %v853
        %855 = vmatmul.bf16.gmra.mxu0 %v755
        %v856 = vpop.f32.mrf.mxu0
        %v857 = vadd.f32 %v777, %v856
        %v858 = vpop.f32.mrf.mxu0
        %v859 = vadd.f32 %v777, %v858
        %860 = vmatmul.bf16.gmra.mxu0 %v756
        %v861 = vpop.f32.mrf.mxu0
        %v862 = vadd.f32 %v777, %v861
        %v863 = vpop.f32.mrf.mxu0
        %v864 = vadd.f32 %v777, %v863
        %865 = vmatmul.bf16.gmra.mxu0 %v757
        %v866 = vpop.f32.mrf.mxu0
        %v867 = vadd.f32 %v777, %v866
        %v868 = vpop.f32.mrf.mxu0
        %v869 = vadd.f32 %v777, %v868
        %870 = vmatmul.bf16.gmra.mxu0 %v758
        %v871 = vpop.f32.mrf.mxu0
        %v872 = vadd.f32 %v777, %v871
        %v873 = vpop.f32.mrf.mxu0
        %v874 = vadd.f32 %v777, %v873
        %875 = vdwg.mxu0
        %876 = vst [vmem:[%s326] sm:$0xff] %v837
        %877 = vst [vmem:[%s326 + $0x8] sm:$0xff] %v839
        %878 = vst [vmem:[%s326 + $0x10] sm:$0xff] %v842
        %879 = vst [vmem:[%s326 + $0x18] sm:$0xff] %v844
        %880 = vst [vmem:[%s326 + $0x20] sm:$0xff] %v847
        %881 = vst [vmem:[%s326 + $0x28] sm:$0xff] %v849
        %882 = vst [vmem:[%s326 + $0x30] sm:$0xff] %v852
        %883 = vst [vmem:[%s326 + $0x38] sm:$0xff] %v854
        %884 = vst [vmem:[%s326 + $0x40] sm:$0xff] %v857
        %885 = vst [vmem:[%s326 + $0x48] sm:$0xff] %v859
        %886 = vst [vmem:[%s326 + $0x50] sm:$0xff] %v862
        %887 = vst [vmem:[%s326 + $0x58] sm:$0xff] %v864
        %888 = vst [vmem:[%s326 + $0x60] sm:$0xff] %v867
        %889 = vst [vmem:[%s326 + $0x68] sm:$0xff] %v869
        %890 = vst [vmem:[%s326 + $0x70] sm:$0xff] %v872
        %891 = vst [vmem:[%s326 + $0x78] sm:$0xff] %v874
        %s892 = sand.u32 %s225, 1
        %s893 = scalar_lea.sflag [#allocation3], %s892
        %s894 = sand.u32 %s225, 1
        %s895 = smul.addr %s894, 128
        %s896 = scalar_lea.vmem [#allocation2], %s895
        // Predicated region
        $region57: #{tpu_custom_call.1} parent=55 // pred_check
          %p897 = pneg %p235
        $region58: #{tpu_custom_call.1} parent=55 // pred_check_branch
          %899 = sbr.rel (%p897) target = $region60
        $region59: #{tpu_custom_call.1} parent=55 // pred_region
          %s900 = smul.u32 16, %s23
          %902 = vsyncadd %s893, 0
          %s903 = smul.addr %s900, 8
          %s904 = scalar_lea.hbm %s9, %s903
          %s905 = sshll.u32 %s896, 4
          %s906 = int_to_ptr.vmem [resolvable:$true] %s905
          %s907 = sshll.u32 %s904, 4
          %s908 = int_to_ptr.hbm [resolvable:$true] %s907
          %913 = dma.vmem_to_hbm [thread:$0]  %s906, 2048, %s908, %s893, 128, 128, 8
        $region60: #{tpu_custom_call.1} parent=55 // pred_fallthru
          _
      $region56: #{tpu_custom_call.1} parent=5 // pred_fallthru
        _
      %p914 = scmp.le.s32.totalorder 2, %s18
      // Predicated region
      $region61: #{tpu_custom_call.1} parent=5 // pred_check
        %p915 = pneg %p914
      $region62: #{tpu_custom_call.1} parent=5 // pred_check_branch
        %917 = sbr.rel (%p915) target = $region64
      $region63: #{tpu_custom_call.1} parent=5 // pred_region
        %s918 = ssub.s32 %s18, 2
        // Predicated region
        $region65: #{tpu_custom_call.1} parent=63 // pred_check
          %p919 = pneg %p241
        $region66: #{tpu_custom_call.1} parent=63 // pred_check_branch
          %921 = sbr.rel (%p919) target = $region68
        $region67: #{tpu_custom_call.1} parent=63 // pred_region
          %s922 = sand.u32 %s226, 1
          %s923 = scalar_lea.sflag [#allocation3], %s922
          %s924 = sand.u32 %s226, 1
          %s925 = smul.addr %s924, 128
          %s926 = scalar_lea.vmem [#allocation2], %s925
          %928 = dma.done %s923, 2048
        $region68: #{tpu_custom_call.1} parent=63 // pred_fallthru
          _
      $region64: #{tpu_custom_call.1} parent=5 // pred_fallthru
        _
    $region6: #{tpu_custom_call.1} parent=1 // loop_footer
      %s22 = sadd.s32 1, %s18
    $region7: #{tpu_custom_call.1} parent=1 // loop_footer_branch
      %17 = sbr.rel target = $region3
    $region8: #{tpu_custom_call.1} parent=1 // loop_exit
      _
    %929 = vsyncpa [#allocation3], 1
    %s930 = scalar_lea.sflag [#allocation3], 1
    %931 = vsyncpa %s930, 1

</llo_original>
